<compile_context>
chip_gen: v7x
topology: tpu7x:2x2x1
jax: 0.10.0
libtpu: 0.0.40
codegen_flags: <defaults>
</compile_context>

<pallas_src>
import jax
import jax.numpy as jnp
from jax.experimental import pallas as pl
from jax.experimental.pallas import tpu as pltpu

K_IN = 3
F_OUT = 5
EPS = 1e-5
LANES = 128


def _round_up(a: int, m: int) -> int:
    return (a + m - 1) // m * m


def _stats_kernel(w_ref, x_ref, psum_ref, psq_ref):
    # w_ref:   (5, 3) f32 in SMEM (scalar reads -> vector-scalar splats)
    # x_ref:   (3, TM, 128) f32 packed input tile
    # psum_ref/psq_ref: (1, 5, 8, 128) per-tile lane/sublane-parallel partials
    tm = x_ref.shape[1]
    x0 = x_ref[0]
    x1 = x_ref[1]
    x2 = x_ref[2]
    for f in range(F_OUT):  # statically unrolled (F_OUT = 5)
        # Linear (bias cancelled by BN): y_f = sum_k w[f,k] * x_k, pure VPU.
        y = w_ref[f, 0] * x0 + w_ref[f, 1] * x1 + w_ref[f, 2] * x2   # (TM, 128)
        # (TM,128) -> (TM//8, 8, 128) keeps the (8,128) vreg tiling intact, so
        # the axis-0 reduce is just elementwise vreg adds (no XLU).
        yr = y.reshape(tm // 8, 8, LANES)
        psum_ref[0, f] = jnp.sum(yr, axis=0)
        psq_ref[0, f] = jnp.sum(yr * yr, axis=0)


def _apply_kernel(w_ref, scale_ref, shift_ref, x_ref, o_ref):
    # w_ref: (5,3) SMEM; scale_ref/shift_ref: (5,) SMEM; x_ref: (3,TM,128);
    # o_ref: (5,TM,128) -> full 128-lane stores.
    x0 = x_ref[0]
    x1 = x_ref[1]
    x2 = x_ref[2]
    for f in range(F_OUT):
        y = w_ref[f, 0] * x0 + w_ref[f, 1] * x1 + w_ref[f, 2] * x2
        o_ref[f] = y * scale_ref[f] + shift_ref[f]


def dummy_model_forward_packed(x_packed, w, gamma, beta, n_valid, *, tile_rows=1024):
    """Feature-major fast path.

    x_packed: (3, M, 128) f32, zero-padded past the first n_valid batch
    elements (batch element b lives at [:, b // 128, b % 128]).  Returns the
    packed output (5, M, 128).  M must be a multiple of tile_rows.
    """
    k, m, lanes = x_packed.shape
    assert k == K_IN and lanes == LANES
    tm = min(tile_rows, m)
    assert tm % 8 == 0 and m % tm == 0
    nt = m // tm

    w32 = w.astype(jnp.float32)
    smem = pl.BlockSpec(memory_space=pltpu.MemorySpace.SMEM)

    # VMEM budget: double-buffered in/out blocks + elementwise temps, capped
    # below v7x's 64 MiB physical VMEM.
    x_block_bytes = K_IN * tm * LANES * 4
    o_block_bytes = F_OUT * tm * LANES * 4
    vmem_limit = min(48 * 1024 * 1024,
                     2 * (x_block_bytes + o_block_bytes) + (16 << 20))

    # ---- Pass 1: per-tile partial statistics (parallel over tiles). ----
    psum, psq = pl.pallas_call(
        _stats_kernel,
        out_shape=(jax.ShapeDtypeStruct((nt, F_OUT, 8, LANES), jnp.float32),
                   jax.ShapeDtypeStruct((nt, F_OUT, 8, LANES), jnp.float32)),
        grid=(nt,),
        in_specs=[smem,
                  pl.BlockSpec((K_IN, tm, LANES), lambda t: (0, t, 0))],
        out_specs=(pl.BlockSpec((1, F_OUT, 8, LANES), lambda t: (t, 0, 0, 0)),
                   pl.BlockSpec((1, F_OUT, 8, LANES), lambda t: (t, 0, 0, 0))),
        compiler_params=pltpu.CompilerParams(
            dimension_semantics=("parallel",),
            vmem_limit_bytes=vmem_limit),
    )(w32, x_packed)

    # ---- Tiny XLA reduction + scale/shift (only place n_valid is used). ----
    n_f = jnp.asarray(n_valid, jnp.float32)
    sum_y = jnp.sum(psum, axis=(0, 2, 3))                    # (5,)
    sumsq_y = jnp.sum(psq, axis=(0, 2, 3))                   # (5,)
    mean = sum_y / n_f
    # Biased variance via E[y^2] - mean^2 (f32); clamp guards tiny negative
    # rounding.  NOTE: can cancel for |mean| >> std at very large batches.
    var = jnp.maximum(sumsq_y / n_f - mean * mean, 0.0)
    inv_std = jax.lax.rsqrt(var + EPS)
    scale = gamma.astype(jnp.float32) * inv_std
    shift = beta.astype(jnp.float32) - mean * scale

    # ---- Pass 2: normalize + store (parallel over tiles). ----
    out_packed = pl.pallas_call(
        _apply_kernel,
        out_shape=jax.ShapeDtypeStruct((F_OUT, m, LANES), jnp.float32),
        grid=(nt,),
        in_specs=[smem, smem, smem,
                  pl.BlockSpec((K_IN, tm, LANES), lambda t: (0, t, 0))],
        out_specs=pl.BlockSpec((F_OUT, tm, LANES), lambda t: (0, t, 0)),
        compiler_params=pltpu.CompilerParams(
            dimension_semantics=("parallel",),
            vmem_limit_bytes=vmem_limit),
    )(w32, scale, shift, x_packed)

    return out_packed


def dummy_model_forward(x, w, b, gamma, beta, *, tile_rows=1024):
    """PyTorch-layout entry. x: (N, 3) f32; w: (5, 3) fc.weight; b/gamma/beta: (5,).

    Returns (N, 5) f32.  b is accepted for API parity with nn.Linear but is
    unused: it cancels exactly under training-mode BatchNorm1d.

    Layout note (per review): the transpose/pad below and the final transpose
    move more HBM bytes than the kernels themselves; callers that can produce
    and consume feature-major (3, M, 128) / (5, M, 128) slabs should call
    dummy_model_forward_packed directly and skip this plumbing.
    """
    del b
    n, k = x.shape
    assert k == K_IN
    tile_rows = max(8, _round_up(tile_rows, 8))

    m = _round_up((n + LANES - 1) // LANES, 8)   # packed rows, multiple of 8
    tm = min(tile_rows, m)
    m = _round_up(m, tm)
    n_pad = m * LANES

    x_packed = jnp.pad(x.astype(jnp.float32).T, ((0, 0), (0, n_pad - n)))
    x_packed = x_packed.reshape(K_IN, m, LANES)

    out_packed = dummy_model_forward_packed(
        x_packed, w, gamma, beta, n, tile_rows=tm)

    return out_packed.reshape(F_OUT, n_pad)[:, :n].T


def init_params(key):
    # PyTorch-equivalent shapes/init:
    #   fc.weight: (5, 3), fc.bias: (5,) ~ U(-1/sqrt(3), 1/sqrt(3))
    #   bn.weight (gamma) = ones(5), bn.bias (beta) = zeros(5)
    kw, kb = jax.random.split(key)
    bound = 1.0 / jnp.sqrt(3.0)
    w = jax.random.uniform(kw, (F_OUT, K_IN), jnp.float32, -bound, bound)
    b = jax.random.uniform(kb, (F_OUT,), jnp.float32, -bound, bound)
    gamma = jnp.ones((F_OUT,), jnp.float32)
    beta = jnp.zeros((F_OUT,), jnp.float32)
    return w, b, gamma, beta


if __name__ == "__main__":
    key = jax.random.PRNGKey(0)
    k_x, k_p = jax.random.split(key)

    batch = 8
    x = jax.random.normal(k_x, (batch, K_IN), jnp.float32)
    w, b, gamma, beta = init_params(k_p)

    out = dummy_model_forward(x, w, b, gamma, beta)
    out = jax.block_until_ready(out)

    # Reference: PyTorch training-mode forward, bias INCLUDED, showing the
    # kernel's bias elision is exact.
    y_ref = x @ w.T + b
    mean = y_ref.mean(axis=0, keepdims=True)
    var = ((y_ref - mean) ** 2).mean(axis=0, keepdims=True)
    ref = (y_ref - mean) / jnp.sqrt(var + EPS) * gamma + beta

    assert out.shape == (batch, F_OUT)
    assert jnp.allclose(out, ref, atol=1e-4, rtol=1e-4)

    print("KERNEL_OK")
</pallas_src>

<mosaic_0001>
module attributes {stable_mosaic.version = 11 : i64} {
  func.func @_stats_kernel(%arg0: i32, %arg1: memref<5x3xf32, #tpu.memory_space<smem>>, %arg2: memref<3x8x128xf32, #tpu.memory_space<vmem>>, %arg3: memref<1x5x8x128xf32, #tpu.memory_space<vmem>>, %arg4: memref<1x5x8x128xf32, #tpu.memory_space<vmem>>) attributes {dimension_semantics = [#tpu.dimension_semantics<parallel>], iteration_bounds = array<i64: 1>, scalar_prefetch = 0 : i64, scratch_operands = 0 : i64, tpu.core_type = #tpu.core_type<tc>, window_params = [{transform_indices = @transform_0, window_bounds = array<i64: 5, 3>}, {transform_indices = @transform_1, window_bounds = array<i64: 3, 8, 128>}, {transform_indices = @transform_2, window_bounds = array<i64: 1, 5, 8, 128>}, {transform_indices = @transform_3, window_bounds = array<i64: 1, 5, 8, 128>}]} {
    %c0 = arith.constant 0 : index
    %c0_0 = arith.constant 0 : index
    %c0_1 = arith.constant 0 : index
    %0 = vector.load %arg2[%c0, %c0_0, %c0_1] : memref<3x8x128xf32, #tpu.memory_space<vmem>>, vector<1x8x128xf32>
    %1 = vector.shape_cast %0 : vector<1x8x128xf32> to vector<8x128xf32>
    %c1 = arith.constant 1 : index
    %c0_2 = arith.constant 0 : index
    %c0_3 = arith.constant 0 : index
    %2 = vector.load %arg2[%c1, %c0_2, %c0_3] : memref<3x8x128xf32, #tpu.memory_space<vmem>>, vector<1x8x128xf32>
    %3 = vector.shape_cast %2 : vector<1x8x128xf32> to vector<8x128xf32>
    %c2 = arith.constant 2 : index
    %c0_4 = arith.constant 0 : index
    %c0_5 = arith.constant 0 : index
    %4 = vector.load %arg2[%c2, %c0_4, %c0_5] : memref<3x8x128xf32, #tpu.memory_space<vmem>>, vector<1x8x128xf32>
    %5 = vector.shape_cast %4 : vector<1x8x128xf32> to vector<8x128xf32>
    %c0_6 = arith.constant 0 : index
    %c0_7 = arith.constant 0 : index
    %6 = memref.load %arg1[%c0_6, %c0_7] : memref<5x3xf32, #tpu.memory_space<smem>>
    %7 = vector.broadcast %6 : f32 to vector<8x128xf32>
    %8 = arith.mulf %7, %1 : vector<8x128xf32>
    %c0_8 = arith.constant 0 : index
    %c1_9 = arith.constant 1 : index
    %9 = memref.load %arg1[%c0_8, %c1_9] : memref<5x3xf32, #tpu.memory_space<smem>>
    %10 = vector.broadcast %9 : f32 to vector<8x128xf32>
    %11 = arith.mulf %10, %3 : vector<8x128xf32>
    %12 = arith.addf %8, %11 : vector<8x128xf32>
    %c0_10 = arith.constant 0 : index
    %c2_11 = arith.constant 2 : index
    %13 = memref.load %arg1[%c0_10, %c2_11] : memref<5x3xf32, #tpu.memory_space<smem>>
    %14 = vector.broadcast %13 : f32 to vector<8x128xf32>
    %15 = arith.mulf %14, %5 : vector<8x128xf32>
    %16 = arith.addf %12, %15 : vector<8x128xf32>
    %17 = vector.shape_cast %16 : vector<8x128xf32> to vector<1x8x128xf32>
    %cst = arith.constant dense<0.000000e+00> : vector<8x128xf32>
    %18 = vector.multi_reduction <add>, %17, %cst [0] : vector<1x8x128xf32> to vector<8x128xf32>
    %c0_12 = arith.constant 0 : index
    %c0_13 = arith.constant 0 : index
    %c0_14 = arith.constant 0 : index
    %c0_15 = arith.constant 0 : index
    %19 = vector.load %arg3[%c0_12, %c0_13, %c0_14, %c0_15] : memref<1x5x8x128xf32, #tpu.memory_space<vmem>>, vector<1x1x8x128xf32>
    %20 = vector.shape_cast %19 : vector<1x1x8x128xf32> to vector<8x128xf32>
    %21 = vector.shape_cast %18 : vector<8x128xf32> to vector<1x1x8x128xf32>
    tpu.vector_store %arg3[%c0_12, %c0_13, %c0_14, %c0_15], %21 {strides = array<i32>} : memref<1x5x8x128xf32, #tpu.memory_space<vmem>>, vector<1x1x8x128xf32>,
    %22 = arith.mulf %17, %17 : vector<1x8x128xf32>
    %cst_16 = arith.constant dense<0.000000e+00> : vector<8x128xf32>
    %23 = vector.multi_reduction <add>, %22, %cst_16 [0] : vector<1x8x128xf32> to vector<8x128xf32>
    %c0_17 = arith.constant 0 : index
    %c0_18 = arith.constant 0 : index
    %c0_19 = arith.constant 0 : index
    %c0_20 = arith.constant 0 : index
    %24 = vector.load %arg4[%c0_17, %c0_18, %c0_19, %c0_20] : memref<1x5x8x128xf32, #tpu.memory_space<vmem>>, vector<1x1x8x128xf32>
    %25 = vector.shape_cast %24 : vector<1x1x8x128xf32> to vector<8x128xf32>
    %26 = vector.shape_cast %23 : vector<8x128xf32> to vector<1x1x8x128xf32>
    tpu.vector_store %arg4[%c0_17, %c0_18, %c0_19, %c0_20], %26 {strides = array<i32>} : memref<1x5x8x128xf32, #tpu.memory_space<vmem>>, vector<1x1x8x128xf32>,
    %c1_21 = arith.constant 1 : index
    %c0_22 = arith.constant 0 : index
    %27 = memref.load %arg1[%c1_21, %c0_22] : memref<5x3xf32, #tpu.memory_space<smem>>
    %28 = vector.broadcast %27 : f32 to vector<8x128xf32>
    %29 = arith.mulf %28, %1 : vector<8x128xf32>
    %c1_23 = arith.constant 1 : index
    %c1_24 = arith.constant 1 : index
    %30 = memref.load %arg1[%c1_23, %c1_24] : memref<5x3xf32, #tpu.memory_space<smem>>
    %31 = vector.broadcast %30 : f32 to vector<8x128xf32>
    %32 = arith.mulf %31, %3 : vector<8x128xf32>
    %33 = arith.addf %29, %32 : vector<8x128xf32>
    %c1_25 = arith.constant 1 : index
    %c2_26 = arith.constant 2 : index
    %34 = memref.load %arg1[%c1_25, %c2_26] : memref<5x3xf32, #tpu.memory_space<smem>>
    %35 = vector.broadcast %34 : f32 to vector<8x128xf32>
    %36 = arith.mulf %35, %5 : vector<8x128xf32>
    %37 = arith.addf %33, %36 : vector<8x128xf32>
    %38 = vector.shape_cast %37 : vector<8x128xf32> to vector<1x8x128xf32>
    %cst_27 = arith.constant dense<0.000000e+00> : vector<8x128xf32>
    %39 = vector.multi_reduction <add>, %38, %cst_27 [0] : vector<1x8x128xf32> to vector<8x128xf32>
    %c0_28 = arith.constant 0 : index
    %c1_29 = arith.constant 1 : index
    %c0_30 = arith.constant 0 : index
    %c0_31 = arith.constant 0 : index
    %40 = vector.load %arg3[%c0_28, %c1_29, %c0_30, %c0_31] : memref<1x5x8x128xf32, #tpu.memory_space<vmem>>, vector<1x1x8x128xf32>
    %41 = vector.shape_cast %40 : vector<1x1x8x128xf32> to vector<8x128xf32>
    %42 = vector.shape_cast %39 : vector<8x128xf32> to vector<1x1x8x128xf32>
    tpu.vector_store %arg3[%c0_28, %c1_29, %c0_30, %c0_31], %42 {strides = array<i32>} : memref<1x5x8x128xf32, #tpu.memory_space<vmem>>, vector<1x1x8x128xf32>,
    %43 = arith.mulf %38, %38 : vector<1x8x128xf32>
    %cst_32 = arith.constant dense<0.000000e+00> : vector<8x128xf32>
    %44 = vector.multi_reduction <add>, %43, %cst_32 [0] : vector<1x8x128xf32> to vector<8x128xf32>
    %c0_33 = arith.constant 0 : index
    %c1_34 = arith.constant 1 : index
    %c0_35 = arith.constant 0 : index
    %c0_36 = arith.constant 0 : index
    %45 = vector.load %arg4[%c0_33, %c1_34, %c0_35, %c0_36] : memref<1x5x8x128xf32, #tpu.memory_space<vmem>>, vector<1x1x8x128xf32>
    %46 = vector.shape_cast %45 : vector<1x1x8x128xf32> to vector<8x128xf32>
    %47 = vector.shape_cast %44 : vector<8x128xf32> to vector<1x1x8x128xf32>
    tpu.vector_store %arg4[%c0_33, %c1_34, %c0_35, %c0_36], %47 {strides = array<i32>} : memref<1x5x8x128xf32, #tpu.memory_space<vmem>>, vector<1x1x8x128xf32>,
    %c2_37 = arith.constant 2 : index
    %c0_38 = arith.constant 0 : index
    %48 = memref.load %arg1[%c2_37, %c0_38] : memref<5x3xf32, #tpu.memory_space<smem>>
    %49 = vector.broadcast %48 : f32 to vector<8x128xf32>
    %50 = arith.mulf %49, %1 : vector<8x128xf32>
    %c2_39 = arith.constant 2 : index
    %c1_40 = arith.constant 1 : index
    %51 = memref.load %arg1[%c2_39, %c1_40] : memref<5x3xf32, #tpu.memory_space<smem>>
    %52 = vector.broadcast %51 : f32 to vector<8x128xf32>
    %53 = arith.mulf %52, %3 : vector<8x128xf32>
    %54 = arith.addf %50, %53 : vector<8x128xf32>
    %c2_41 = arith.constant 2 : index
    %c2_42 = arith.constant 2 : index
    %55 = memref.load %arg1[%c2_41, %c2_42] : memref<5x3xf32, #tpu.memory_space<smem>>
    %56 = vector.broadcast %55 : f32 to vector<8x128xf32>
    %57 = arith.mulf %56, %5 : vector<8x128xf32>
    %58 = arith.addf %54, %57 : vector<8x128xf32>
    %59 = vector.shape_cast %58 : vector<8x128xf32> to vector<1x8x128xf32>
    %cst_43 = arith.constant dense<0.000000e+00> : vector<8x128xf32>
    %60 = vector.multi_reduction <add>, %59, %cst_43 [0] : vector<1x8x128xf32> to vector<8x128xf32>
    %c0_44 = arith.constant 0 : index
    %c2_45 = arith.constant 2 : index
    %c0_46 = arith.constant 0 : index
    %c0_47 = arith.constant 0 : index
    %61 = vector.load %arg3[%c0_44, %c2_45, %c0_46, %c0_47] : memref<1x5x8x128xf32, #tpu.memory_space<vmem>>, vector<1x1x8x128xf32>
    %62 = vector.shape_cast %61 : vector<1x1x8x128xf32> to vector<8x128xf32>
    %63 = vector.shape_cast %60 : vector<8x128xf32> to vector<1x1x8x128xf32>
    tpu.vector_store %arg3[%c0_44, %c2_45, %c0_46, %c0_47], %63 {strides = array<i32>} : memref<1x5x8x128xf32, #tpu.memory_space<vmem>>, vector<1x1x8x128xf32>,
    %64 = arith.mulf %59, %59 : vector<1x8x128xf32>
    %cst_48 = arith.constant dense<0.000000e+00> : vector<8x128xf32>
    %65 = vector.multi_reduction <add>, %64, %cst_48 [0] : vector<1x8x128xf32> to vector<8x128xf32>
    %c0_49 = arith.constant 0 : index
    %c2_50 = arith.constant 2 : index
    %c0_51 = arith.constant 0 : index
    %c0_52 = arith.constant 0 : index
    %66 = vector.load %arg4[%c0_49, %c2_50, %c0_51, %c0_52] : memref<1x5x8x128xf32, #tpu.memory_space<vmem>>, vector<1x1x8x128xf32>
    %67 = vector.shape_cast %66 : vector<1x1x8x128xf32> to vector<8x128xf32>
    %68 = vector.shape_cast %65 : vector<8x128xf32> to vector<1x1x8x128xf32>
    tpu.vector_store %arg4[%c0_49, %c2_50, %c0_51, %c0_52], %68 {strides = array<i32>} : memref<1x5x8x128xf32, #tpu.memory_space<vmem>>, vector<1x1x8x128xf32>,
    %c3 = arith.constant 3 : index
    %c0_53 = arith.constant 0 : index
    %69 = memref.load %arg1[%c3, %c0_53] : memref<5x3xf32, #tpu.memory_space<smem>>
    %70 = vector.broadcast %69 : f32 to vector<8x128xf32>
    %71 = arith.mulf %70, %1 : vector<8x128xf32>
    %c3_54 = arith.constant 3 : index
    %c1_55 = arith.constant 1 : index
    %72 = memref.load %arg1[%c3_54, %c1_55] : memref<5x3xf32, #tpu.memory_space<smem>>
    %73 = vector.broadcast %72 : f32 to vector<8x128xf32>
    %74 = arith.mulf %73, %3 : vector<8x128xf32>
    %75 = arith.addf %71, %74 : vector<8x128xf32>
    %c3_56 = arith.constant 3 : index
    %c2_57 = arith.constant 2 : index
    %76 = memref.load %arg1[%c3_56, %c2_57] : memref<5x3xf32, #tpu.memory_space<smem>>
    %77 = vector.broadcast %76 : f32 to vector<8x128xf32>
    %78 = arith.mulf %77, %5 : vector<8x128xf32>
    %79 = arith.addf %75, %78 : vector<8x128xf32>
    %80 = vector.shape_cast %79 : vector<8x128xf32> to vector<1x8x128xf32>
    %cst_58 = arith.constant dense<0.000000e+00> : vector<8x128xf32>
    %81 = vector.multi_reduction <add>, %80, %cst_58 [0] : vector<1x8x128xf32> to vector<8x128xf32>
    %c0_59 = arith.constant 0 : index
    %c3_60 = arith.constant 3 : index
    %c0_61 = arith.constant 0 : index
    %c0_62 = arith.constant 0 : index
    %82 = vector.load %arg3[%c0_59, %c3_60, %c0_61, %c0_62] : memref<1x5x8x128xf32, #tpu.memory_space<vmem>>, vector<1x1x8x128xf32>
    %83 = vector.shape_cast %82 : vector<1x1x8x128xf32> to vector<8x128xf32>
    %84 = vector.shape_cast %81 : vector<8x128xf32> to vector<1x1x8x128xf32>
    tpu.vector_store %arg3[%c0_59, %c3_60, %c0_61, %c0_62], %84 {strides = array<i32>} : memref<1x5x8x128xf32, #tpu.memory_space<vmem>>, vector<1x1x8x128xf32>,
    %85 = arith.mulf %80, %80 : vector<1x8x128xf32>
    %cst_63 = arith.constant dense<0.000000e+00> : vector<8x128xf32>
    %86 = vector.multi_reduction <add>, %85, %cst_63 [0] : vector<1x8x128xf32> to vector<8x128xf32>
    %c0_64 = arith.constant 0 : index
    %c3_65 = arith.constant 3 : index
    %c0_66 = arith.constant 0 : index
    %c0_67 = arith.constant 0 : index
    %87 = vector.load %arg4[%c0_64, %c3_65, %c0_66, %c0_67] : memref<1x5x8x128xf32, #tpu.memory_space<vmem>>, vector<1x1x8x128xf32>
    %88 = vector.shape_cast %87 : vector<1x1x8x128xf32> to vector<8x128xf32>
    %89 = vector.shape_cast %86 : vector<8x128xf32> to vector<1x1x8x128xf32>
    tpu.vector_store %arg4[%c0_64, %c3_65, %c0_66, %c0_67], %89 {strides = array<i32>} : memref<1x5x8x128xf32, #tpu.memory_space<vmem>>, vector<1x1x8x128xf32>,
    %c4 = arith.constant 4 : index
    %c0_68 = arith.constant 0 : index
    %90 = memref.load %arg1[%c4, %c0_68] : memref<5x3xf32, #tpu.memory_space<smem>>
    %91 = vector.broadcast %90 : f32 to vector<8x128xf32>
    %92 = arith.mulf %91, %1 : vector<8x128xf32>
    %c4_69 = arith.constant 4 : index
    %c1_70 = arith.constant 1 : index
    %93 = memref.load %arg1[%c4_69, %c1_70] : memref<5x3xf32, #tpu.memory_space<smem>>
    %94 = vector.broadcast %93 : f32 to vector<8x128xf32>
    %95 = arith.mulf %94, %3 : vector<8x128xf32>
    %96 = arith.addf %92, %95 : vector<8x128xf32>
    %c4_71 = arith.constant 4 : index
    %c2_72 = arith.constant 2 : index
    %97 = memref.load %arg1[%c4_71, %c2_72] : memref<5x3xf32, #tpu.memory_space<smem>>
    %98 = vector.broadcast %97 : f32 to vector<8x128xf32>
    %99 = arith.mulf %98, %5 : vector<8x128xf32>
    %100 = arith.addf %96, %99 : vector<8x128xf32>
    %101 = vector.shape_cast %100 : vector<8x128xf32> to vector<1x8x128xf32>
    %cst_73 = arith.constant dense<0.000000e+00> : vector<8x128xf32>
    %102 = vector.multi_reduction <add>, %101, %cst_73 [0] : vector<1x8x128xf32> to vector<8x128xf32>
    %c0_74 = arith.constant 0 : index
    %c4_75 = arith.constant 4 : index
    %c0_76 = arith.constant 0 : index
    %c0_77 = arith.constant 0 : index
    %103 = vector.load %arg3[%c0_74, %c4_75, %c0_76, %c0_77] : memref<1x5x8x128xf32, #tpu.memory_space<vmem>>, vector<1x1x8x128xf32>
    %104 = vector.shape_cast %103 : vector<1x1x8x128xf32> to vector<8x128xf32>
    %105 = vector.shape_cast %102 : vector<8x128xf32> to vector<1x1x8x128xf32>
    tpu.vector_store %arg3[%c0_74, %c4_75, %c0_76, %c0_77], %105 {strides = array<i32>} : memref<1x5x8x128xf32, #tpu.memory_space<vmem>>, vector<1x1x8x128xf32>,
    %106 = arith.mulf %101, %101 : vector<1x8x128xf32>
    %cst_78 = arith.constant dense<0.000000e+00> : vector<8x128xf32>
    %107 = vector.multi_reduction <add>, %106, %cst_78 [0] : vector<1x8x128xf32> to vector<8x128xf32>
    %c0_79 = arith.constant 0 : index
    %c4_80 = arith.constant 4 : index
    %c0_81 = arith.constant 0 : index
    %c0_82 = arith.constant 0 : index
    %108 = vector.load %arg4[%c0_79, %c4_80, %c0_81, %c0_82] : memref<1x5x8x128xf32, #tpu.memory_space<vmem>>, vector<1x1x8x128xf32>
    %109 = vector.shape_cast %108 : vector<1x1x8x128xf32> to vector<8x128xf32>
    %110 = vector.shape_cast %107 : vector<8x128xf32> to vector<1x1x8x128xf32>
    tpu.vector_store %arg4[%c0_79, %c4_80, %c0_81, %c0_82], %110 {strides = array<i32>} : memref<1x5x8x128xf32, #tpu.memory_space<vmem>>, vector<1x1x8x128xf32>,
    return
  }
  func.func @transform_0(%arg0: i32) -> (i32, i32) {
    %c0_i32 = arith.constant 0 : i32
    %c0_i32_0 = arith.constant 0 : i32
    %c0_i32_1 = arith.constant 0 : i32
    return %c0_i32, %c0_i32_0 : i32, i32
  }
  func.func @transform_1(%arg0: i32) -> (i32, i32, i32) {
    %c0_i32 = arith.constant 0 : i32
    %c0_i32_0 = arith.constant 0 : i32
    %c0_i32_1 = arith.constant 0 : i32
    return %c0_i32, %arg0, %c0_i32_0 : i32, i32, i32
  }
  func.func @transform_2(%arg0: i32) -> (i32, i32, i32, i32) {
    %c0_i32 = arith.constant 0 : i32
    %c0_i32_0 = arith.constant 0 : i32
    %c0_i32_1 = arith.constant 0 : i32
    %c0_i32_2 = arith.constant 0 : i32
    return %arg0, %c0_i32, %c0_i32_0, %c0_i32_1 : i32, i32, i32, i32
  }
  func.func @transform_3(%arg0: i32) -> (i32, i32, i32, i32) {
    %c0_i32 = arith.constant 0 : i32
    %c0_i32_0 = arith.constant 0 : i32
    %c0_i32_1 = arith.constant 0 : i32
    %c0_i32_2 = arith.constant 0 : i32
    return %arg0, %c0_i32, %c0_i32_0, %c0_i32_1 : i32, i32, i32, i32
  }
}

</mosaic_0001>

<llo_original>
// kernel: tpu_custom_call.1
$region0: #{tpu_custom_call.1}
  #allocation0 [shape = 'u32[]', space=smem, size = 0x4, offset = 0x4, fixed_abs, tag = 'smem constant byte address 0x4 - core index']
  #allocation1 [shape = 'u32[144,128]{1,0:T(1,128)}', space=vmem, size = 0x12000, scoped, tag = 'internal scratch']
  %s0 = inlined_call_operand.vmem [shape: f32[5,3], index: 0, kind: input, shape index: {}]
  %s1 = inlined_call_operand.hbm [shape: f32[3,8,128], index: 1, kind: input, shape index: {}]
  %s2 = inlined_call_operand.hbm [shape: f32[1,5,8,128], index: 2, kind: output, shape index: {0}]
  %s3 = inlined_call_operand.hbm [shape: f32[1,5,8,128], index: 3, kind: output, shape index: {1}]
  %4 = xla_tuple %s2, %s3
  %s5 = sld [smem:[#allocation0]]
  $region34: #{tpu_custom_call.1} parent=0
    _
  %s7 = ssub.s32 1, %s5
  %s8 = scalar_select 0, %s7, %s5
  $region1: #{tpu_custom_call.1} parent=0
    #allocation2 [shape = 'u8[4096]{0}', space=smem, size = 0x1000, scoped, tag = 'input window, operand 0, single buffered']
    #allocation3 [shape = 's32[1]{0}', space=sflag, size = 0x4, scoped, tag = 'scoped memory for tpu_custom_call.1']
    #allocation4 [shape = 's32[1]{0}', space=sflag, size = 0x4, scoped, tag = 'scoped memory for tpu_custom_call.1']
    #allocation5 [shape = 's32[1]{0}', space=sflag, size = 0x4, scoped, tag = 'scoped memory for tpu_custom_call.1']
    #allocation6 [shape = 'u8[12288]{0}', space=vmem, size = 0x3000, scoped, tag = 'input window, operand 1, single buffered']
    #allocation7 [shape = 'u8[20480]{0}', space=vmem, size = 0x5000, scoped, tag = 'output window, operand 0, single buffered']
    #allocation8 [shape = 'u8[20480]{0}', space=vmem, size = 0x5000, scoped, tag = 'output window, operand 1, single buffered']
    #allocation9 [shape = 's32[1]{0}', space=sflag, size = 0x4, scoped, tag = 'scoped memory for tpu_custom_call.1']
    %9 = vsyncpa [#allocation5], 0
    %10 = vsyncpa [#allocation3], 0
    %11 = vsyncpa [#allocation4], 0
    %12 = vsyncpa [#allocation9], 0
    // Predicated region
    $region2: #{tpu_custom_call.1} parent=1 // pred_check
      _
    $region3: #{tpu_custom_call.1} parent=1 // pred_check_branch
      %14 = sbr.rel (0) target = $region5
    $region4: #{tpu_custom_call.1} parent=1 // pred_region
      %s16 = ssub.s32 128, 128
      %17 = vsyncadd [#allocation5], %s16
      %s19 = sshll.u32 %s0, 4
      %s20 = int_to_ptr.vmem [resolvable:$true] %s19
      %22 = dma.vmem_to_smem %s20, 128, [#allocation2], [#allocation5]
    $region5: #{tpu_custom_call.1} parent=1 // pred_fallthru
      _
    // Predicated region
    $region6: #{tpu_custom_call.1} parent=1 // pred_check
      _
    $region7: #{tpu_custom_call.1} parent=1 // pred_check_branch
      %24 = sbr.rel (0) target = $region9
    $region8: #{tpu_custom_call.1} parent=1 // pred_region
      %s26 = ssub.s32 384, 384
      %27 = vsyncadd [#allocation3], %s26
      %s28 = sshll.u32 [#allocation6], 4
      %s29 = int_to_ptr.vmem [resolvable:$true] %s28
      %34 = dma.hbm_to_vmem [thread:$0]  %s1, 384, %s29, [#allocation3], 128, 128, 8
    $region9: #{tpu_custom_call.1} parent=1 // pred_fallthru
      _
    // Predicated region
    $region10: #{tpu_custom_call.1} parent=1 // pred_check
      _
    $region11: #{tpu_custom_call.1} parent=1 // pred_check_branch
      %36 = sbr.rel (0) target = $region13
    $region12: #{tpu_custom_call.1} parent=1 // pred_region
      %37 = dma.done [#allocation5], 128
    $region13: #{tpu_custom_call.1} parent=1 // pred_fallthru
      _
    // Predicated region
    $region14: #{tpu_custom_call.1} parent=1 // pred_check
      _
    $region15: #{tpu_custom_call.1} parent=1 // pred_check_branch
      %39 = sbr.rel (0) target = $region17
    $region16: #{tpu_custom_call.1} parent=1 // pred_region
      %40 = dma.done [#allocation3], 384
    $region17: #{tpu_custom_call.1} parent=1 // pred_fallthru
      _
    %41 = sfence
    %v42 = vld [vmem:[#allocation6] sm:$0xff]
    %s43 = scalar_lea.vmem [#allocation6], 8
    %v44 = vld [vmem:[%s43] sm:$0xff]
    %s45 = scalar_lea.vmem [#allocation6], 16
    %v46 = vld [vmem:[%s45] sm:$0xff]
    %s47 = sld [smem:[#allocation2]]
    %v48 = vstv %s47
    %v49 = vmul.f32 %v48, %v42
    %s50 = sld [smem:[#allocation2 + $0x1]]
    %v51 = vstv %s50
    %v52 = vmul.f32 %v51, %v44
    %v53 = vadd.f32 %v49, %v52
    %s54 = sld [smem:[#allocation2 + $0x2]]
    %v55 = vstv %s54
    %v56 = vmul.f32 %v55, %v46
    %v57 = vadd.f32 %v53, %v56
    %v58 = vadd.f32 %v57, 0.0
    %59 = vst [vmem:[#allocation7] sm:$0xff] %v58
    %v60 = vmul.f32 %v57, %v57
    %v61 = vadd.f32 %v60, 0.0
    %62 = vst [vmem:[#allocation8] sm:$0xff] %v61
    %s63 = sld [smem:[#allocation2 + $0x80]]
    %v64 = vstv %s63
    %v65 = vmul.f32 %v64, %v42
    %s66 = sld [smem:[#allocation2 + $0x81]]
    %v67 = vstv %s66
    %v68 = vmul.f32 %v67, %v44
    %v69 = vadd.f32 %v65, %v68
    %s70 = sld [smem:[#allocation2 + $0x82]]
    %v71 = vstv %s70
    %v72 = vmul.f32 %v71, %v46
    %v73 = vadd.f32 %v69, %v72
    %v74 = vadd.f32 %v73, 0.0
    %s75 = scalar_lea.vmem [#allocation7], 8
    %76 = vst [vmem:[%s75] sm:$0xff] %v74
    %v77 = vmul.f32 %v73, %v73
    %v78 = vadd.f32 %v77, 0.0
    %s79 = scalar_lea.vmem [#allocation8], 8
    %80 = vst [vmem:[%s79] sm:$0xff] %v78
    %s81 = sld [smem:[#allocation2 + $0x100]]
    %v82 = vstv %s81
    %v83 = vmul.f32 %v82, %v42
    %s84 = sld [smem:[#allocation2 + $0x101]]
    %v85 = vstv %s84
    %v86 = vmul.f32 %v85, %v44
    %v87 = vadd.f32 %v83, %v86
    %s88 = sld [smem:[#allocation2 + $0x102]]
    %v89 = vstv %s88
    %v90 = vmul.f32 %v89, %v46
    %v91 = vadd.f32 %v87, %v90
    %v92 = vadd.f32 %v91, 0.0
    %s93 = scalar_lea.vmem [#allocation7], 16
    %94 = vst [vmem:[%s93] sm:$0xff] %v92
    %v95 = vmul.f32 %v91, %v91
    %v96 = vadd.f32 %v95, 0.0
    %s97 = scalar_lea.vmem [#allocation8], 16
    %98 = vst [vmem:[%s97] sm:$0xff] %v96
    %s99 = sld [smem:[#allocation2 + $0x180]]
    %v100 = vstv %s99
    %v101 = vmul.f32 %v100, %v42
    %s102 = sld [smem:[#allocation2 + $0x181]]
    %v103 = vstv %s102
    %v104 = vmul.f32 %v103, %v44
    %v105 = vadd.f32 %v101, %v104
    %s106 = sld [smem:[#allocation2 + $0x182]]
    %v107 = vstv %s106
    %v108 = vmul.f32 %v107, %v46
    %v109 = vadd.f32 %v105, %v108
    %v110 = vadd.f32 %v109, 0.0
    %s111 = scalar_lea.vmem [#allocation7], 24
    %112 = vst [vmem:[%s111] sm:$0xff] %v110
    %v113 = vmul.f32 %v109, %v109
    %v114 = vadd.f32 %v113, 0.0
    %s115 = scalar_lea.vmem [#allocation8], 24
    %116 = vst [vmem:[%s115] sm:$0xff] %v114
    %s117 = sld [smem:[#allocation2 + $0x200]]
    %v118 = vstv %s117
    %v119 = vmul.f32 %v118, %v42
    %s120 = sld [smem:[#allocation2 + $0x201]]
    %v121 = vstv %s120
    %v122 = vmul.f32 %v121, %v44
    %v123 = vadd.f32 %v119, %v122
    %s124 = sld [smem:[#allocation2 + $0x202]]
    %v125 = vstv %s124
    %v126 = vmul.f32 %v125, %v46
    %v127 = vadd.f32 %v123, %v126
    %v128 = vadd.f32 %v127, 0.0
    %s129 = scalar_lea.vmem [#allocation7], 32
    %130 = vst [vmem:[%s129] sm:$0xff] %v128
    %v131 = vmul.f32 %v127, %v127
    %v132 = vadd.f32 %v131, 0.0
    %s133 = scalar_lea.vmem [#allocation8], 32
    %134 = vst [vmem:[%s133] sm:$0xff] %v132
    // Predicated region
    $region18: #{tpu_custom_call.1} parent=1 // pred_check
      _
    $region19: #{tpu_custom_call.1} parent=1 // pred_check_branch
      %136 = sbr.rel (0) target = $region21
    $region20: #{tpu_custom_call.1} parent=1 // pred_region
      %s138 = ssub.s32 640, 640
      %139 = vsyncadd [#allocation4], %s138
      %s140 = sshll.u32 [#allocation7], 4
      %s141 = int_to_ptr.vmem [resolvable:$true] %s140
      %146 = dma.vmem_to_hbm [thread:$0]  %s141, 640, %s2, [#allocation4], 128, 128, 8
    $region21: #{tpu_custom_call.1} parent=1 // pred_fallthru
      _
    // Predicated region
    $region22: #{tpu_custom_call.1} parent=1 // pred_check
      _
    $region23: #{tpu_custom_call.1} parent=1 // pred_check_branch
      %148 = sbr.rel (0) target = $region25
    $region24: #{tpu_custom_call.1} parent=1 // pred_region
      %s150 = ssub.s32 640, 640
      %151 = vsyncadd [#allocation9], %s150
      %s152 = sshll.u32 [#allocation8], 4
      %s153 = int_to_ptr.vmem [resolvable:$true] %s152
      %158 = dma.vmem_to_hbm [thread:$0]  %s153, 640, %s3, [#allocation9], 128, 128, 8
    $region25: #{tpu_custom_call.1} parent=1 // pred_fallthru
      _
    // Predicated region
    $region26: #{tpu_custom_call.1} parent=1 // pred_check
      _
    $region27: #{tpu_custom_call.1} parent=1 // pred_check_branch
      %160 = sbr.rel (0) target = $region29
    $region28: #{tpu_custom_call.1} parent=1 // pred_region
      %161 = dma.done [#allocation4], 640
    $region29: #{tpu_custom_call.1} parent=1 // pred_fallthru
      _
    // Predicated region
    $region30: #{tpu_custom_call.1} parent=1 // pred_check
      _
    $region31: #{tpu_custom_call.1} parent=1 // pred_check_branch
      %163 = sbr.rel (0) target = $region33
    $region32: #{tpu_custom_call.1} parent=1 // pred_region
      %164 = dma.done [#allocation9], 640
    $region33: #{tpu_custom_call.1} parent=1 // pred_fallthru
      _
    %165 = vsyncpa [#allocation3], 1
    %166 = vsyncpa [#allocation4], 1
    %167 = vsyncpa [#allocation9], 1
    %168 = vsyncpa [#allocation5], 1

</llo_original>
